<compile_context>
chip_gen: v5e
topology: v5e:2x2
jax: 0.10.0
libtpu: 0.0.40
codegen_flags: <defaults>
</compile_context>

<pallas_src>
import functools
import math

import jax
import jax.numpy as jnp
import numpy as np
from jax.experimental import pallas as pl
from jax.experimental.pallas import tpu as pltpu

N_ITER = 3  # matches DynamicPooling(n_iter=3)


def _round_up(v, m):
    return ((v + m - 1) // m) * m


def _dynamic_pooling_kernel(x_ref, m_ref, w_ref, s_ref, *, n_iter):
    # x_ref: (TB, N, D)  bags x instances x features  (contiguous HBM slab, no transposes)
    # m_ref: (TB, N)     per-instance mask
    # w_ref: (TB, N)     attention weights output
    # s_ref: (TB, D)     squashed pooled vector output
    x = x_ref[...].astype(jnp.float32)             # (TB, N, D)
    m2 = m_ref[...].astype(jnp.float32)            # (TB, N)

    tb, n_inst, d_feat = x.shape
    b = jnp.zeros((tb, n_inst), jnp.float32)       # routing logits
    s = jnp.zeros((tb, d_feat), jnp.float32)       # squashed pooled vector

    def softmax_over_instances(logits):
        # softmax over the N instances (lane-axis reduce, vectorized over bags)
        logits = logits - jnp.max(logits, axis=1, keepdims=True)
        e = jnp.exp(logits)
        inv = pl.reciprocal(jnp.sum(e, axis=1, keepdims=True), approx=False)
        return e * inv

    # n_iter is tiny and static -> unroll the routing iterations in-kernel.
    for _ in range(n_iter):
        w = softmax_over_instances(m2 * b)                       # (TB, N)

        # Mask folded into the weights: sigma[t,d] = sum_n (w*m)[t,n] * x[t,n,d]
        wm = w * m2                                              # (TB, N)
        sigma = jnp.sum(wm[:, :, None] * x, axis=1)              # (TB, D)

        # Squash: scale = ||sigma||^2 / (1 + ||sigma||^2) / (||sigma|| + 1e-8)
        norm2 = jnp.sum(sigma * sigma, axis=1, keepdims=True)    # (TB, 1)
        norm = jnp.sqrt(norm2)
        scale = norm2 * pl.reciprocal((1.0 + norm2) * (norm + 1e-8), approx=False)
        s = scale * sigma                                        # (TB, D)

        # b_new[t,n] = m[t,n] * sum_d s[t,d] * x[t,n,d]  (mask applied after D-reduce)
        b = b + m2 * jnp.sum(s[:, None, :] * x, axis=2)          # (TB, N)

    w_fin = softmax_over_instances(b)                            # final w = softmax(b)

    w_ref[...] = w_fin.astype(w_ref.dtype)
    s_ref[...] = s.astype(s_ref.dtype)


def _choose_block_bags(B, N, D):
    """Bags per grid step, from the padded per-bag VMEM footprint; grid>=2 when B>8."""
    if B <= 8:
        return B  # full extent -> single tiny block
    # f32 VMEM bytes of one bag of the x tile, including (sublane, lane) padding.
    per_bag = _round_up(N, 8) * _round_up(D, 128) * 4
    budget = 16 * 1024 * 1024  # double-buffered input (2x) + ~3 in-flight temporaries
    tb = budget // (5 * per_bag)
    tb = max(8, min(1024, (tb // 8) * 8))
    # Guarantee grid >= 2 so both v7x TensorCores get work (costs nothing on v5e/v6e).
    tb = min(tb, _round_up(-(-B // 2), 8))
    return tb


def dynamic_pooling(x, m, n_iter=N_ITER):
    """Pallas implementation of DynamicPooling.forward(x, m) -> (w, s)."""
    B, N, D = x.shape
    assert m.shape == (B, N, 1) or m.shape == (B, N)
    m2 = m.reshape(B, N)

    tb = _choose_block_bags(B, N, D)
    n_blocks = -(-B // tb)      # cdiv
    Bp = n_blocks * tb          # outputs allocated padded; inputs read with edge padding

    kernel = functools.partial(_dynamic_pooling_kernel, n_iter=n_iter)

    w, s = pl.pallas_call(
        kernel,
        out_shape=(
            jax.ShapeDtypeStruct((Bp, N), x.dtype),
            jax.ShapeDtypeStruct((Bp, D), x.dtype),
        ),
        grid=(n_blocks,),
        in_specs=[
            pl.BlockSpec((tb, N, D), lambda i: (i, 0, 0)),
            pl.BlockSpec((tb, N), lambda i: (i, 0)),
        ],
        out_specs=(
            pl.BlockSpec((tb, N), lambda i: (i, 0)),
            pl.BlockSpec((tb, D), lambda i: (i, 0)),
        ),
        compiler_params=pltpu.CompilerParams(
            dimension_semantics=("parallel",),
            vmem_limit_bytes=32 * 1024 * 1024,
        ),
    )(x, m2)

    if Bp != B:
        w = w[:B]
        s = s[:B]
    return w, s


def dynamic_pooling_ref(x, m, n_iter=N_ITER):
    """Pure-JAX reference mirroring the PyTorch code exactly."""
    x = m * x
    B, N, D = x.shape
    b = jnp.zeros((B, N, 1), x.dtype)
    s = jnp.zeros((B, 1, D), x.dtype)
    for _ in range(n_iter):
        w = jax.nn.softmax(m * b, axis=1)                  # (B, N, 1)
        w_t = jnp.transpose(w, (0, 2, 1))                  # (B, 1, N)
        sigma = jnp.einsum("bon,bnd->bod", w_t, x)         # (B, 1, D)
        norm = jnp.linalg.norm(sigma, axis=2, keepdims=True)
        scale = norm**2 / (1 + norm**2) / (norm + 1e-8)
        s = scale * sigma                                  # (B, 1, D)
        b_new = jnp.sum(s * x, axis=2)                     # (B, N)
        b = b + b_new.reshape(B, N, 1)
    w = jax.nn.softmax(b, axis=1)
    return w.reshape(B, N), s.reshape(B, D)


if __name__ == "__main__":
    key = jax.random.PRNGKey(0)
    kx, km, kx2, km2 = jax.random.split(key, 4)

    # Small case (single block, full-extent tile).
    B, N, D = 2, 8, 32  # batch of bags, 8 instances per bag, 32 descriptor features
    x = jax.random.normal(kx, (B, N, D), dtype=jnp.float32)
    m = (jax.random.uniform(km, (B, N, 1)) > 0.3).astype(jnp.float32)  # binary instance mask

    w, s = dynamic_pooling(x, m)
    jax.block_until_ready((w, s))

    w_ref, s_ref = dynamic_pooling_ref(x, m)
    np.testing.assert_allclose(np.asarray(w), np.asarray(w_ref), rtol=1e-5, atol=1e-5)
    np.testing.assert_allclose(np.asarray(s), np.asarray(s_ref), rtol=1e-5, atol=1e-5)

    # Medium case exercising the multi-block (grid >= 2 / megacore) path.
    B2 = 304
    x2 = jax.random.normal(kx2, (B2, N, D), dtype=jnp.float32)
    m2 = (jax.random.uniform(km2, (B2, N, 1)) > 0.3).astype(jnp.float32)
    w2, s2 = dynamic_pooling(x2, m2)
    jax.block_until_ready((w2, s2))
    w2_ref, s2_ref = dynamic_pooling_ref(x2, m2)
    np.testing.assert_allclose(np.asarray(w2), np.asarray(w2_ref), rtol=1e-5, atol=1e-5)
    np.testing.assert_allclose(np.asarray(s2), np.asarray(s2_ref), rtol=1e-5, atol=1e-5)

    print("KERNEL_OK")
</pallas_src>

<mosaic_0001>
module attributes {stable_mosaic.version = 11 : i64} {
  func.func @_dynamic_pooling_kernel(%arg0: i32, %arg1: memref<2x8x32xf32, #tpu.memory_space<vmem>>, %arg2: memref<2x8xf32, #tpu.memory_space<vmem>>, %arg3: memref<2x8xf32, #tpu.memory_space<vmem>>, %arg4: memref<2x32xf32, #tpu.memory_space<vmem>>) attributes {dimension_semantics = [#tpu.dimension_semantics<parallel>], iteration_bounds = array<i64: 1>, scalar_prefetch = 0 : i64, scratch_operands = 0 : i64, tpu.core_type = #tpu.core_type<tc>, window_params = [{transform_indices = @transform_0, window_bounds = array<i64: 2, 8, 32>}, {transform_indices = @transform_1, window_bounds = array<i64: 2, 8>}, {transform_indices = @transform_2, window_bounds = array<i64: 2, 8>}, {transform_indices = @transform_3, window_bounds = array<i64: 2, 32>}]} {
    %c0 = arith.constant 0 : index
    %c0_0 = arith.constant 0 : index
    %c0_1 = arith.constant 0 : index
    %0 = vector.load %arg1[%c0, %c0_0, %c0_1] : memref<2x8x32xf32, #tpu.memory_space<vmem>>, vector<2x8x32xf32>
    %c0_2 = arith.constant 0 : index
    %c0_3 = arith.constant 0 : index
    %1 = vector.load %arg2[%c0_2, %c0_3] : memref<2x8xf32, #tpu.memory_space<vmem>>, vector<2x8xf32>
    %cst = arith.constant 0.000000e+00 : f32
    %2 = vector.broadcast %cst : f32 to vector<2x8xf32>
    %3 = arith.mulf %1, %2 : vector<2x8xf32>
    %cst_4 = arith.constant dense<0xFF800000> : vector<2xf32>
    %4 = vector.multi_reduction <maximumf>, %3, %cst_4 [1] : vector<2x8xf32> to vector<2xf32>
    %5 = vector.shape_cast %4 : vector<2xf32> to vector<2x1xf32>
    %6 = vector.broadcast %5 : vector<2x1xf32> to vector<2x8xf32>
    %7 = arith.subf %3, %6 : vector<2x8xf32>
    %8 = math.exp %7 : vector<2x8xf32>
    %cst_5 = arith.constant dense<0.000000e+00> : vector<2xf32>
    %9 = vector.multi_reduction <add>, %8, %cst_5 [1] : vector<2x8xf32> to vector<2xf32>
    %10 = vector.shape_cast %9 : vector<2xf32> to vector<2x1xf32>
    %11 = tpu.reciprocal %10 : vector<2x1xf32> -> vector<2x1xf32>
    %12 = vector.broadcast %11 : vector<2x1xf32> to vector<2x8xf32>
    %13 = arith.mulf %8, %12 : vector<2x8xf32>
    %14 = arith.mulf %13, %1 : vector<2x8xf32>
    %15 = vector.shape_cast %14 : vector<2x8xf32> to vector<2x8x1xf32>
    %16 = vector.broadcast %15 : vector<2x8x1xf32> to vector<2x8x32xf32>
    %17 = arith.mulf %16, %0 : vector<2x8x32xf32>
    %cst_6 = arith.constant dense<0.000000e+00> : vector<2x32xf32>
    %18 = vector.multi_reduction <add>, %17, %cst_6 [1] : vector<2x8x32xf32> to vector<2x32xf32>
    %19 = arith.mulf %18, %18 : vector<2x32xf32>
    %cst_7 = arith.constant dense<0.000000e+00> : vector<2xf32>
    %20 = vector.multi_reduction <add>, %19, %cst_7 [1] : vector<2x32xf32> to vector<2xf32>
    %21 = vector.shape_cast %20 : vector<2xf32> to vector<2x1xf32>
    %22 = math.sqrt %21 : vector<2x1xf32>
    %cst_8 = arith.constant 1.000000e+00 : f32
    %23 = vector.broadcast %cst_8 : f32 to vector<2x1xf32>
    %24 = arith.addf %23, %21 : vector<2x1xf32>
    %cst_9 = arith.constant 9.99999993E-9 : f32
    %25 = vector.broadcast %cst_9 : f32 to vector<2x1xf32>
    %26 = arith.addf %22, %25 : vector<2x1xf32>
    %27 = arith.mulf %24, %26 : vector<2x1xf32>
    %28 = tpu.reciprocal %27 : vector<2x1xf32> -> vector<2x1xf32>
    %29 = arith.mulf %21, %28 : vector<2x1xf32>
    %30 = vector.broadcast %29 : vector<2x1xf32> to vector<2x32xf32>
    %31 = arith.mulf %30, %18 : vector<2x32xf32>
    %32 = vector.shape_cast %31 : vector<2x32xf32> to vector<2x1x32xf32>
    %33 = vector.broadcast %32 : vector<2x1x32xf32> to vector<2x8x32xf32>
    %34 = arith.mulf %33, %0 : vector<2x8x32xf32>
    %cst_10 = arith.constant dense<0.000000e+00> : vector<2x8xf32>
    %35 = vector.multi_reduction <add>, %34, %cst_10 [2] : vector<2x8x32xf32> to vector<2x8xf32>
    %36 = arith.mulf %1, %35 : vector<2x8xf32>
    %37 = arith.addf %2, %36 : vector<2x8xf32>
    %38 = arith.mulf %1, %37 : vector<2x8xf32>
    %cst_11 = arith.constant dense<0xFF800000> : vector<2xf32>
    %39 = vector.multi_reduction <maximumf>, %38, %cst_11 [1] : vector<2x8xf32> to vector<2xf32>
    %40 = vector.shape_cast %39 : vector<2xf32> to vector<2x1xf32>
    %41 = vector.broadcast %40 : vector<2x1xf32> to vector<2x8xf32>
    %42 = arith.subf %38, %41 : vector<2x8xf32>
    %43 = math.exp %42 : vector<2x8xf32>
    %cst_12 = arith.constant dense<0.000000e+00> : vector<2xf32>
    %44 = vector.multi_reduction <add>, %43, %cst_12 [1] : vector<2x8xf32> to vector<2xf32>
    %45 = vector.shape_cast %44 : vector<2xf32> to vector<2x1xf32>
    %46 = tpu.reciprocal %45 : vector<2x1xf32> -> vector<2x1xf32>
    %47 = vector.broadcast %46 : vector<2x1xf32> to vector<2x8xf32>
    %48 = arith.mulf %43, %47 : vector<2x8xf32>
    %49 = arith.mulf %48, %1 : vector<2x8xf32>
    %50 = vector.shape_cast %49 : vector<2x8xf32> to vector<2x8x1xf32>
    %51 = vector.broadcast %50 : vector<2x8x1xf32> to vector<2x8x32xf32>
    %52 = arith.mulf %51, %0 : vector<2x8x32xf32>
    %cst_13 = arith.constant dense<0.000000e+00> : vector<2x32xf32>
    %53 = vector.multi_reduction <add>, %52, %cst_13 [1] : vector<2x8x32xf32> to vector<2x32xf32>
    %54 = arith.mulf %53, %53 : vector<2x32xf32>
    %cst_14 = arith.constant dense<0.000000e+00> : vector<2xf32>
    %55 = vector.multi_reduction <add>, %54, %cst_14 [1] : vector<2x32xf32> to vector<2xf32>
    %56 = vector.shape_cast %55 : vector<2xf32> to vector<2x1xf32>
    %57 = math.sqrt %56 : vector<2x1xf32>
    %cst_15 = arith.constant 1.000000e+00 : f32
    %58 = vector.broadcast %cst_15 : f32 to vector<2x1xf32>
    %59 = arith.addf %58, %56 : vector<2x1xf32>
    %cst_16 = arith.constant 9.99999993E-9 : f32
    %60 = vector.broadcast %cst_16 : f32 to vector<2x1xf32>
    %61 = arith.addf %57, %60 : vector<2x1xf32>
    %62 = arith.mulf %59, %61 : vector<2x1xf32>
    %63 = tpu.reciprocal %62 : vector<2x1xf32> -> vector<2x1xf32>
    %64 = arith.mulf %56, %63 : vector<2x1xf32>
    %65 = vector.broadcast %64 : vector<2x1xf32> to vector<2x32xf32>
    %66 = arith.mulf %65, %53 : vector<2x32xf32>
    %67 = vector.shape_cast %66 : vector<2x32xf32> to vector<2x1x32xf32>
    %68 = vector.broadcast %67 : vector<2x1x32xf32> to vector<2x8x32xf32>
    %69 = arith.mulf %68, %0 : vector<2x8x32xf32>
    %cst_17 = arith.constant dense<0.000000e+00> : vector<2x8xf32>
    %70 = vector.multi_reduction <add>, %69, %cst_17 [2] : vector<2x8x32xf32> to vector<2x8xf32>
    %71 = arith.mulf %1, %70 : vector<2x8xf32>
    %72 = arith.addf %37, %71 : vector<2x8xf32>
    %73 = arith.mulf %1, %72 : vector<2x8xf32>
    %cst_18 = arith.constant dense<0xFF800000> : vector<2xf32>
    %74 = vector.multi_reduction <maximumf>, %73, %cst_18 [1] : vector<2x8xf32> to vector<2xf32>
    %75 = vector.shape_cast %74 : vector<2xf32> to vector<2x1xf32>
    %76 = vector.broadcast %75 : vector<2x1xf32> to vector<2x8xf32>
    %77 = arith.subf %73, %76 : vector<2x8xf32>
    %78 = math.exp %77 : vector<2x8xf32>
    %cst_19 = arith.constant dense<0.000000e+00> : vector<2xf32>
    %79 = vector.multi_reduction <add>, %78, %cst_19 [1] : vector<2x8xf32> to vector<2xf32>
    %80 = vector.shape_cast %79 : vector<2xf32> to vector<2x1xf32>
    %81 = tpu.reciprocal %80 : vector<2x1xf32> -> vector<2x1xf32>
    %82 = vector.broadcast %81 : vector<2x1xf32> to vector<2x8xf32>
    %83 = arith.mulf %78, %82 : vector<2x8xf32>
    %84 = arith.mulf %83, %1 : vector<2x8xf32>
    %85 = vector.shape_cast %84 : vector<2x8xf32> to vector<2x8x1xf32>
    %86 = vector.broadcast %85 : vector<2x8x1xf32> to vector<2x8x32xf32>
    %87 = arith.mulf %86, %0 : vector<2x8x32xf32>
    %cst_20 = arith.constant dense<0.000000e+00> : vector<2x32xf32>
    %88 = vector.multi_reduction <add>, %87, %cst_20 [1] : vector<2x8x32xf32> to vector<2x32xf32>
    %89 = arith.mulf %88, %88 : vector<2x32xf32>
    %cst_21 = arith.constant dense<0.000000e+00> : vector<2xf32>
    %90 = vector.multi_reduction <add>, %89, %cst_21 [1] : vector<2x32xf32> to vector<2xf32>
    %91 = vector.shape_cast %90 : vector<2xf32> to vector<2x1xf32>
    %92 = math.sqrt %91 : vector<2x1xf32>
    %cst_22 = arith.constant 1.000000e+00 : f32
    %93 = vector.broadcast %cst_22 : f32 to vector<2x1xf32>
    %94 = arith.addf %93, %91 : vector<2x1xf32>
    %cst_23 = arith.constant 9.99999993E-9 : f32
    %95 = vector.broadcast %cst_23 : f32 to vector<2x1xf32>
    %96 = arith.addf %92, %95 : vector<2x1xf32>
    %97 = arith.mulf %94, %96 : vector<2x1xf32>
    %98 = tpu.reciprocal %97 : vector<2x1xf32> -> vector<2x1xf32>
    %99 = arith.mulf %91, %98 : vector<2x1xf32>
    %100 = vector.broadcast %99 : vector<2x1xf32> to vector<2x32xf32>
    %101 = arith.mulf %100, %88 : vector<2x32xf32>
    %102 = vector.shape_cast %101 : vector<2x32xf32> to vector<2x1x32xf32>
    %103 = vector.broadcast %102 : vector<2x1x32xf32> to vector<2x8x32xf32>
    %104 = arith.mulf %103, %0 : vector<2x8x32xf32>
    %cst_24 = arith.constant dense<0.000000e+00> : vector<2x8xf32>
    %105 = vector.multi_reduction <add>, %104, %cst_24 [2] : vector<2x8x32xf32> to vector<2x8xf32>
    %106 = arith.mulf %1, %105 : vector<2x8xf32>
    %107 = arith.addf %72, %106 : vector<2x8xf32>
    %cst_25 = arith.constant dense<0xFF800000> : vector<2xf32>
    %108 = vector.multi_reduction <maximumf>, %107, %cst_25 [1] : vector<2x8xf32> to vector<2xf32>
    %109 = vector.shape_cast %108 : vector<2xf32> to vector<2x1xf32>
    %110 = vector.broadcast %109 : vector<2x1xf32> to vector<2x8xf32>
    %111 = arith.subf %107, %110 : vector<2x8xf32>
    %112 = math.exp %111 : vector<2x8xf32>
    %cst_26 = arith.constant dense<0.000000e+00> : vector<2xf32>
    %113 = vector.multi_reduction <add>, %112, %cst_26 [1] : vector<2x8xf32> to vector<2xf32>
    %114 = vector.shape_cast %113 : vector<2xf32> to vector<2x1xf32>
    %115 = tpu.reciprocal %114 : vector<2x1xf32> -> vector<2x1xf32>
    %116 = vector.broadcast %115 : vector<2x1xf32> to vector<2x8xf32>
    %117 = arith.mulf %112, %116 : vector<2x8xf32>
    %c0_27 = arith.constant 0 : index
    %c0_28 = arith.constant 0 : index
    %118 = vector.load %arg3[%c0_27, %c0_28] : memref<2x8xf32, #tpu.memory_space<vmem>>, vector<2x8xf32>
    tpu.vector_store %arg3[%c0_27, %c0_28], %117 {strides = array<i32>} : memref<2x8xf32, #tpu.memory_space<vmem>>, vector<2x8xf32>,
    %c0_29 = arith.constant 0 : index
    %c0_30 = arith.constant 0 : index
    %119 = vector.load %arg4[%c0_29, %c0_30] : memref<2x32xf32, #tpu.memory_space<vmem>>, vector<2x32xf32>
    tpu.vector_store %arg4[%c0_29, %c0_30], %101 {strides = array<i32>} : memref<2x32xf32, #tpu.memory_space<vmem>>, vector<2x32xf32>,
    return
  }
  func.func @transform_0(%arg0: i32) -> (i32, i32, i32) {
    %c0_i32 = arith.constant 0 : i32
    %c0_i32_0 = arith.constant 0 : i32
    %c0_i32_1 = arith.constant 0 : i32
    return %arg0, %c0_i32, %c0_i32_0 : i32, i32, i32
  }
  func.func @transform_1(%arg0: i32) -> (i32, i32) {
    %c0_i32 = arith.constant 0 : i32
    %c0_i32_0 = arith.constant 0 : i32
    return %arg0, %c0_i32 : i32, i32
  }
  func.func @transform_2(%arg0: i32) -> (i32, i32) {
    %c0_i32 = arith.constant 0 : i32
    %c0_i32_0 = arith.constant 0 : i32
    return %arg0, %c0_i32 : i32, i32
  }
  func.func @transform_3(%arg0: i32) -> (i32, i32) {
    %c0_i32 = arith.constant 0 : i32
    %c0_i32_0 = arith.constant 0 : i32
    return %arg0, %c0_i32 : i32, i32
  }
}

</mosaic_0001>

<llo_original>
// kernel: tpu_custom_call.1
$region0: #{tpu_custom_call.1}
  #allocation0 [shape = 'u32[]', space=smem, size = 0x4, offset = 0x4, fixed_abs, tag = 'smem constant byte address 0x4 - core index']
  #allocation1 [shape = 'u32[72,128]{1,0:T(1,128)}', space=vmem, size = 0x9000, scoped, tag = 'internal scratch']
  %s0 = inlined_call_operand.hbm [shape: f32[2,8,32], index: 0, kind: input, shape index: {}]
  %s1 = inlined_call_operand.hbm [shape: f32[2,8], index: 1, kind: input, shape index: {}]
  %s2 = inlined_call_operand.hbm [shape: f32[2,8], index: 2, kind: output, shape index: {0}]
  %s3 = inlined_call_operand.hbm [shape: f32[2,32], index: 3, kind: output, shape index: {1}]
  %4 = xla_tuple %s2, %s3
  %s5 = sld [smem:[#allocation0]]
  $region34: #{tpu_custom_call.1} parent=0
    _
  %s7 = ssub.s32 1, %s5
  %s8 = scalar_select 0, %s7, %s5
  $region1: #{tpu_custom_call.1} parent=0
    #allocation2 [shape = 'u8[8192]{0}', space=vmem, size = 0x2000, scoped, tag = 'input window, operand 0, single buffered']
    #allocation3 [shape = 's32[1]{0}', space=sflag, size = 0x4, scoped, tag = 'scoped memory for tpu_custom_call.1']
    #allocation4 [shape = 's32[1]{0}', space=sflag, size = 0x4, scoped, tag = 'scoped memory for tpu_custom_call.1']
    #allocation5 [shape = 'u8[1024]{0}', space=vmem, size = 0x400, scoped, tag = 'input window, operand 1, single buffered']
    #allocation6 [shape = 's32[1]{0}', space=sflag, size = 0x4, scoped, tag = 'scoped memory for tpu_custom_call.1']
    #allocation7 [shape = 'u8[1024]{0}', space=vmem, size = 0x400, scoped, tag = 'output window, operand 0, single buffered']
    #allocation8 [shape = 'u8[1024]{0}', space=vmem, size = 0x400, scoped, tag = 'output window, operand 1, single buffered']
    #allocation9 [shape = 's32[1]{0}', space=sflag, size = 0x4, scoped, tag = 'scoped memory for tpu_custom_call.1']
    %9 = vsyncpa [#allocation3], 0
    %10 = vsyncpa [#allocation6], 0
    %11 = vsyncpa [#allocation4], 0
    %12 = vsyncpa [#allocation9], 0
    // Predicated region
    $region2: #{tpu_custom_call.1} parent=1 // pred_check
      _
    $region3: #{tpu_custom_call.1} parent=1 // pred_check_branch
      %14 = sbr.rel (0) target = $region5
    $region4: #{tpu_custom_call.1} parent=1 // pred_region
      %16 = vsyncadd [#allocation3], 0
      %s17 = sshll.u32 %s0, 4
      %s18 = int_to_ptr.hbm [resolvable:$true] %s17
      %s19 = sshll.u32 [#allocation2], 4
      %s20 = int_to_ptr.vmem [resolvable:$true] %s19
      %25 = dma.hbm_to_vmem [thread:$0]  %s18, 256, %s20, [#allocation3], 128, 128, 8
    $region5: #{tpu_custom_call.1} parent=1 // pred_fallthru
      _
    // Predicated region
    $region6: #{tpu_custom_call.1} parent=1 // pred_check
      _
    $region7: #{tpu_custom_call.1} parent=1 // pred_check_branch
      %27 = sbr.rel (0) target = $region9
    $region8: #{tpu_custom_call.1} parent=1 // pred_region
      %29 = vsyncadd [#allocation6], 0
      %s31 = sshll.u32 %s1, 4
      %s32 = int_to_ptr.hbm [resolvable:$true] %s31
      %s33 = sshll.u32 [#allocation5], 4
      %s34 = int_to_ptr.vmem [resolvable:$true] %s33
      %36 = dma.hbm_to_vmem [thread:$0]  %s32, 32, %s34, [#allocation6]
    $region9: #{tpu_custom_call.1} parent=1 // pred_fallthru
      _
    // Predicated region
    $region10: #{tpu_custom_call.1} parent=1 // pred_check
      _
    $region11: #{tpu_custom_call.1} parent=1 // pred_check_branch
      %38 = sbr.rel (0) target = $region13
    $region12: #{tpu_custom_call.1} parent=1 // pred_region
      %40 = dma.done [#allocation3], 256
    $region13: #{tpu_custom_call.1} parent=1 // pred_fallthru
      _
    // Predicated region
    $region14: #{tpu_custom_call.1} parent=1 // pred_check
      _
    $region15: #{tpu_custom_call.1} parent=1 // pred_check_branch
      %42 = sbr.rel (0) target = $region17
    $region16: #{tpu_custom_call.1} parent=1 // pred_region
      %44 = dma.done [#allocation6], 32
    $region17: #{tpu_custom_call.1} parent=1 // pred_fallthru
      _
    %v45 = vld [vmem:[#allocation2] sm:$0xff]
    %v46 = vld [vmem:[#allocation2 + $0x8] sm:$0xff]
    %v47 = vld [vmem:[#allocation5] sm:$0x3]
    %v48 = vmul.f32 %v47, 0.0
    %vm49 = vcmask 58368
    %v50 = vsel %vm49, %v48, -inf
    %51 = vmax.xlane.f32.xlu0 %v50
    %v52 = vpop.xlane.xlu0 %51
    %v53 = vsub.f32 %v48, %v52
    %v54 = vmul.f32 %v53, 1.442695
    %v55 = vpow.pop %v54
    %v56 = vsel %vm49, %v55, 0.0
    %57 = vadd.xlane.f32.xlu0 %v56
    %v58 = vpop.xlane.xlu0 %57
    %v59 = vrcp.pop %v58
    %v60 = vmul.f32 %v58, %v59
    %v61 = vsub.f32 1.0, %v60
    %v62 = vmul.f32 %v59, %v61
    %v63 = vadd.f32 %v59, %v62
    %vm64 = vweird.f32 %v58
    %vm65 = vweird.f32 %v59
    %vm66 = vmor %vm64, %vm65
    %v67 = vsel %vm66, %v59, %v63
    %v68 = vand.u32 2147483647, %v58
    %vm69 = vcmp.eq.f32.partialorder %v68, 8.507059e+37
    %v70 = vand.u32 %v58, 2147483648
    %v71 = vor.u32 1.1754944e-38, %v70
    %v72 = vsel %vm69, %v71, %v67
    %v73 = vmul.f32 %v55, %v72
    %v74 = vmul.f32 %v73, %v47
    %v75 = vperm.slane %v74, 0
    %v76 = vlaneseq
    %v77 = vshrl.u32 %v76, 7
    %79 = vset.pattern.permute.xlu0 %v77
    %80 = vperm.xlu0 %79, %v75
    %v81 = vpop.permute.xlu0 %80
    %v82 = vperm.slane %v74, 1
    %v83 = vlaneseq
    %v84 = vshrl.u32 %v83, 7
    %86 = vset.pattern.permute.xlu0 %v84
    %87 = vperm.xlu0 %86, %v82
    %v88 = vpop.permute.xlu0 %87
    %v89 = vmul.f32 %v81, %v45
    %v90 = vmul.f32 %v88, %v46
    %vm91 = vcmask 261120
    %v92 = vsel %vm91, %v89, 0.0
    %v93 = vrot.slane %v92, 4
    %v94 = vadd.f32 %v92, %v93
    %v95 = vrot.slane %v94, 2
    %v96 = vadd.f32 %v94, %v95
    %v97 = vrot.slane %v96, 1
    %v98 = vadd.f32 %v96, %v97
    %v99 = vsel %vm91, %v90, 0.0
    %v100 = vrot.slane %v99, 4
    %v101 = vadd.f32 %v99, %v100
    %v102 = vrot.slane %v101, 2
    %v103 = vadd.f32 %v101, %v102
    %v104 = vrot.slane %v103, 1
    %v105 = vadd.f32 %v103, %v104
    %v106 = vmul.f32 %v98, %v98
    %v107 = vmul.f32 %v105, %v105
    %vm110 = vcmask 1041409
    %v111 = vsel %vm110, %v107, %v106
    %vm113 = vcmask 254976
    %v114 = vsel %vm113, %v111, 0.0
    %115 = vadd.xlane.f32.xlu0 %v114
    %v116 = vpop.xlane.xlu0 %115
    %v117 = vrsqrt.pop %v116
    %v118 = vmul.f32 %v117, %v116
    %v119 = vmul.f32 %v118, %v117
    %v120 = vmul.f32 0.5, %v119
    %v121 = vsub.f32 1.5, %v120
    %v122 = vmul.f32 %v117, %v121
    %v123 = vmul.f32 %v116, %v122
    %vm124 = vcmp.eq.f32.partialorder %v116, inf
    %v125 = vsel %vm124, %v116, %v123
    %vm126 = vcmp.eq.f32.partialorder %v116, 0.0
    %v127 = vand.u32 %v116, 2147483648
    %v128 = vsel %vm126, %v127, %v125
    %v129 = vadd.f32 %v116, 1.0
    %v130 = vadd.f32 %v128, 1e-08
    %v131 = vmul.f32 %v129, %v130
    %v132 = vrcp.pop %v131
    %v133 = vmul.f32 %v131, %v132
    %v134 = vsub.f32 1.0, %v133
    %v135 = vmul.f32 %v132, %v134
    %v136 = vadd.f32 %v132, %v135
    %vm137 = vweird.f32 %v131
    %vm138 = vweird.f32 %v132
    %vm139 = vmor %vm137, %vm138
    %v140 = vsel %vm139, %v132, %v136
    %v141 = vand.u32 2147483647, %v131
    %vm142 = vcmp.eq.f32.partialorder %v141, 8.507059e+37
    %v143 = vand.u32 %v131, 2147483648
    %v144 = vor.u32 1.1754944e-38, %v143
    %v145 = vsel %vm142, %v144, %v140
    %v146 = vmul.f32 %v116, %v145
    %v149 = vsel %vm110, %v105, %v98
    %v151 = vmul.f32 %v146, %v149
    %v153 = vrot.slane %v151, 1
    %v154 = vperm.slane %v151, 0
    %v155 = vperm.slane %v153, 0
    %v158 = vmul.f32 %v154, %v45
    %v159 = vmul.f32 %v155, %v46
    %v160 = vsel %vm91, %v158, 0.0
    %161 = vadd.xlane.f32.xlu0 %v160
    %v162 = vpop.xlane.xlu0 %161
    %v163 = vsel %vm91, %v159, 0.0
    %164 = vadd.xlane.f32.xlu0 %v163
    %v165 = vpop.xlane.xlu0 %164
    %v168 = vlaneseq
    %v169 = vand.u32 %v168, 127
    %v170 = vperm.slane %v162, %v169
    %v171 = vperm.slane %v165, %v169
    %v172 = vsel %vm110, %v171, %v170
    %v174 = vmul.f32 %v47, %v172
    %v175 = vadd.f32 %v174, 0.0
    %v176 = vmul.f32 %v47, %v175
    %v177 = vsel %vm49, %v176, -inf
    %178 = vmax.xlane.f32.xlu0 %v177
    %v179 = vpop.xlane.xlu0 %178
    %v180 = vsub.f32 %v176, %v179
    %v181 = vmul.f32 %v180, 1.442695
    %v182 = vpow.pop %v181
    %v183 = vsel %vm49, %v182, 0.0
    %184 = vadd.xlane.f32.xlu0 %v183
    %v185 = vpop.xlane.xlu0 %184
    %v186 = vrcp.pop %v185
    %v187 = vmul.f32 %v185, %v186
    %v188 = vsub.f32 1.0, %v187
    %v189 = vmul.f32 %v186, %v188
    %v190 = vadd.f32 %v186, %v189
    %vm191 = vweird.f32 %v185
    %vm192 = vweird.f32 %v186
    %vm193 = vmor %vm191, %vm192
    %v194 = vsel %vm193, %v186, %v190
    %v195 = vand.u32 2147483647, %v185
    %vm196 = vcmp.eq.f32.partialorder %v195, 8.507059e+37
    %v197 = vand.u32 %v185, 2147483648
    %v198 = vor.u32 1.1754944e-38, %v197
    %v199 = vsel %vm196, %v198, %v194
    %v200 = vmul.f32 %v182, %v199
    %v201 = vmul.f32 %v200, %v47
    %v202 = vperm.slane %v201, 0
    %v203 = vlaneseq
    %v204 = vshrl.u32 %v203, 7
    %206 = vset.pattern.permute.xlu0 %v204
    %207 = vperm.xlu0 %206, %v202
    %v208 = vpop.permute.xlu0 %207
    %v209 = vperm.slane %v201, 1
    %v210 = vlaneseq
    %v211 = vshrl.u32 %v210, 7
    %213 = vset.pattern.permute.xlu0 %v211
    %214 = vperm.xlu0 %213, %v209
    %v215 = vpop.permute.xlu0 %214
    %v216 = vmul.f32 %v208, %v45
    %v217 = vmul.f32 %v215, %v46
    %v218 = vsel %vm91, %v216, 0.0
    %v219 = vrot.slane %v218, 4
    %v220 = vadd.f32 %v218, %v219
    %v221 = vrot.slane %v220, 2
    %v222 = vadd.f32 %v220, %v221
    %v223 = vrot.slane %v222, 1
    %v224 = vadd.f32 %v222, %v223
    %v225 = vsel %vm91, %v217, 0.0
    %v226 = vrot.slane %v225, 4
    %v227 = vadd.f32 %v225, %v226
    %v228 = vrot.slane %v227, 2
    %v229 = vadd.f32 %v227, %v228
    %v230 = vrot.slane %v229, 1
    %v231 = vadd.f32 %v229, %v230
    %v232 = vmul.f32 %v224, %v224
    %v233 = vmul.f32 %v231, %v231
    %v236 = vsel %vm110, %v233, %v232
    %v238 = vsel %vm113, %v236, 0.0
    %239 = vadd.xlane.f32.xlu0 %v238
    %v240 = vpop.xlane.xlu0 %239
    %v241 = vrsqrt.pop %v240
    %v242 = vmul.f32 %v241, %v240
    %v243 = vmul.f32 %v242, %v241
    %v244 = vmul.f32 0.5, %v243
    %v245 = vsub.f32 1.5, %v244
    %v246 = vmul.f32 %v241, %v245
    %v247 = vmul.f32 %v240, %v246
    %vm248 = vcmp.eq.f32.partialorder %v240, inf
    %v249 = vsel %vm248, %v240, %v247
    %vm250 = vcmp.eq.f32.partialorder %v240, 0.0
    %v251 = vand.u32 %v240, 2147483648
    %v252 = vsel %vm250, %v251, %v249
    %v253 = vadd.f32 %v240, 1.0
    %v254 = vadd.f32 %v252, 1e-08
    %v255 = vmul.f32 %v253, %v254
    %v256 = vrcp.pop %v255
    %v257 = vmul.f32 %v255, %v256
    %v258 = vsub.f32 1.0, %v257
    %v259 = vmul.f32 %v256, %v258
    %v260 = vadd.f32 %v256, %v259
    %vm261 = vweird.f32 %v255
    %vm262 = vweird.f32 %v256
    %vm263 = vmor %vm261, %vm262
    %v264 = vsel %vm263, %v256, %v260
    %v265 = vand.u32 2147483647, %v255
    %vm266 = vcmp.eq.f32.partialorder %v265, 8.507059e+37
    %v267 = vand.u32 %v255, 2147483648
    %v268 = vor.u32 1.1754944e-38, %v267
    %v269 = vsel %vm266, %v268, %v264
    %v270 = vmul.f32 %v240, %v269
    %v273 = vsel %vm110, %v231, %v224
    %v275 = vmul.f32 %v270, %v273
    %v277 = vrot.slane %v275, 1
    %v278 = vperm.slane %v275, 0
    %v279 = vperm.slane %v277, 0
    %v282 = vmul.f32 %v278, %v45
    %v283 = vmul.f32 %v279, %v46
    %v284 = vsel %vm91, %v282, 0.0
    %285 = vadd.xlane.f32.xlu0 %v284
    %v286 = vpop.xlane.xlu0 %285
    %v287 = vsel %vm91, %v283, 0.0
    %288 = vadd.xlane.f32.xlu0 %v287
    %v289 = vpop.xlane.xlu0 %288
    %v292 = vperm.slane %v286, %v169
    %v293 = vperm.slane %v289, %v169
    %v294 = vsel %vm110, %v293, %v292
    %v296 = vmul.f32 %v47, %v294
    %v297 = vadd.f32 %v175, %v296
    %v298 = vmul.f32 %v47, %v297
    %v299 = vsel %vm49, %v298, -inf
    %300 = vmax.xlane.f32.xlu0 %v299
    %v301 = vpop.xlane.xlu0 %300
    %v302 = vsub.f32 %v298, %v301
    %v303 = vmul.f32 %v302, 1.442695
    %v304 = vpow.pop %v303
    %v305 = vsel %vm49, %v304, 0.0
    %306 = vadd.xlane.f32.xlu0 %v305
    %v307 = vpop.xlane.xlu0 %306
    %v308 = vrcp.pop %v307
    %v309 = vmul.f32 %v307, %v308
    %v310 = vsub.f32 1.0, %v309
    %v311 = vmul.f32 %v308, %v310
    %v312 = vadd.f32 %v308, %v311
    %vm313 = vweird.f32 %v307
    %vm314 = vweird.f32 %v308
    %vm315 = vmor %vm313, %vm314
    %v316 = vsel %vm315, %v308, %v312
    %v317 = vand.u32 2147483647, %v307
    %vm318 = vcmp.eq.f32.partialorder %v317, 8.507059e+37
    %v319 = vand.u32 %v307, 2147483648
    %v320 = vor.u32 1.1754944e-38, %v319
    %v321 = vsel %vm318, %v320, %v316
    %v322 = vmul.f32 %v304, %v321
    %v323 = vmul.f32 %v322, %v47
    %v324 = vperm.slane %v323, 0
    %v325 = vlaneseq
    %v326 = vshrl.u32 %v325, 7
    %328 = vset.pattern.permute.xlu0 %v326
    %329 = vperm.xlu0 %328, %v324
    %v330 = vpop.permute.xlu0 %329
    %v331 = vperm.slane %v323, 1
    %v332 = vlaneseq
    %v333 = vshrl.u32 %v332, 7
    %335 = vset.pattern.permute.xlu0 %v333
    %336 = vperm.xlu0 %335, %v331
    %v337 = vpop.permute.xlu0 %336
    %v338 = vmul.f32 %v330, %v45
    %v339 = vmul.f32 %v337, %v46
    %v340 = vsel %vm91, %v338, 0.0
    %v341 = vrot.slane %v340, 4
    %v342 = vadd.f32 %v340, %v341
    %v343 = vrot.slane %v342, 2
    %v344 = vadd.f32 %v342, %v343
    %v345 = vrot.slane %v344, 1
    %v346 = vadd.f32 %v344, %v345
    %v347 = vsel %vm91, %v339, 0.0
    %v348 = vrot.slane %v347, 4
    %v349 = vadd.f32 %v347, %v348
    %v350 = vrot.slane %v349, 2
    %v351 = vadd.f32 %v349, %v350
    %v352 = vrot.slane %v351, 1
    %v353 = vadd.f32 %v351, %v352
    %v354 = vmul.f32 %v346, %v346
    %v355 = vmul.f32 %v353, %v353
    %v358 = vsel %vm110, %v355, %v354
    %v360 = vsel %vm113, %v358, 0.0
    %361 = vadd.xlane.f32.xlu0 %v360
    %v362 = vpop.xlane.xlu0 %361
    %v363 = vrsqrt.pop %v362
    %v364 = vmul.f32 %v363, %v362
    %v365 = vmul.f32 %v364, %v363
    %v366 = vmul.f32 0.5, %v365
    %v367 = vsub.f32 1.5, %v366
    %v368 = vmul.f32 %v363, %v367
    %v369 = vmul.f32 %v362, %v368
    %vm370 = vcmp.eq.f32.partialorder %v362, inf
    %v371 = vsel %vm370, %v362, %v369
    %vm372 = vcmp.eq.f32.partialorder %v362, 0.0
    %v373 = vand.u32 %v362, 2147483648
    %v374 = vsel %vm372, %v373, %v371
    %v375 = vadd.f32 %v362, 1.0
    %v376 = vadd.f32 %v374, 1e-08
    %v377 = vmul.f32 %v375, %v376
    %v378 = vrcp.pop %v377
    %v379 = vmul.f32 %v377, %v378
    %v380 = vsub.f32 1.0, %v379
    %v381 = vmul.f32 %v378, %v380
    %v382 = vadd.f32 %v378, %v381
    %vm383 = vweird.f32 %v377
    %vm384 = vweird.f32 %v378
    %vm385 = vmor %vm383, %vm384
    %v386 = vsel %vm385, %v378, %v382
    %v387 = vand.u32 2147483647, %v377
    %vm388 = vcmp.eq.f32.partialorder %v387, 8.507059e+37
    %v389 = vand.u32 %v377, 2147483648
    %v390 = vor.u32 1.1754944e-38, %v389
    %v391 = vsel %vm388, %v390, %v386
    %v392 = vmul.f32 %v362, %v391
    %v395 = vsel %vm110, %v353, %v346
    %v397 = vmul.f32 %v392, %v395
    %v399 = vrot.slane %v397, 1
    %v400 = vperm.slane %v397, 0
    %v401 = vperm.slane %v399, 0
    %v404 = vmul.f32 %v400, %v45
    %v405 = vmul.f32 %v401, %v46
    %v406 = vsel %vm91, %v404, 0.0
    %407 = vadd.xlane.f32.xlu0 %v406
    %v408 = vpop.xlane.xlu0 %407
    %v409 = vsel %vm91, %v405, 0.0
    %410 = vadd.xlane.f32.xlu0 %v409
    %v411 = vpop.xlane.xlu0 %410
    %v414 = vperm.slane %v408, %v169
    %v415 = vperm.slane %v411, %v169
    %v416 = vsel %vm110, %v415, %v414
    %v418 = vmul.f32 %v47, %v416
    %v419 = vadd.f32 %v297, %v418
    %v420 = vsel %vm49, %v419, -inf
    %421 = vmax.xlane.f32.xlu0 %v420
    %v422 = vpop.xlane.xlu0 %421
    %v423 = vsub.f32 %v419, %v422
    %v424 = vmul.f32 %v423, 1.442695
    %v425 = vpow.pop %v424
    %v426 = vsel %vm49, %v425, 0.0
    %427 = vadd.xlane.f32.xlu0 %v426
    %v428 = vpop.xlane.xlu0 %427
    %v429 = vrcp.pop %v428
    %v430 = vmul.f32 %v428, %v429
    %v431 = vsub.f32 1.0, %v430
    %v432 = vmul.f32 %v429, %v431
    %v433 = vadd.f32 %v429, %v432
    %vm434 = vweird.f32 %v428
    %vm435 = vweird.f32 %v429
    %vm436 = vmor %vm434, %vm435
    %v437 = vsel %vm436, %v429, %v433
    %v438 = vand.u32 2147483647, %v428
    %vm439 = vcmp.eq.f32.partialorder %v438, 8.507059e+37
    %v440 = vand.u32 %v428, 2147483648
    %v441 = vor.u32 1.1754944e-38, %v440
    %v442 = vsel %vm439, %v441, %v437
    %v443 = vmul.f32 %v425, %v442
    %444 = vst.msk [vmem:[#allocation7] sm:$0x3] %vm49, %v443
    %445 = vst.msk [vmem:[#allocation8] sm:$0x3] %vm113, %v397
    // Predicated region
    $region18: #{tpu_custom_call.1} parent=1 // pred_check
      _
    $region19: #{tpu_custom_call.1} parent=1 // pred_check_branch
      %447 = sbr.rel (0) target = $region21
    $region20: #{tpu_custom_call.1} parent=1 // pred_region
      %449 = vsyncadd [#allocation4], 0
      %s451 = sshll.u32 [#allocation7], 4
      %s452 = int_to_ptr.vmem [resolvable:$true] %s451
      %s453 = sshll.u32 %s2, 4
      %s454 = int_to_ptr.hbm [resolvable:$true] %s453
      %456 = dma.vmem_to_hbm [thread:$0]  %s452, 32, %s454, [#allocation4]
    $region21: #{tpu_custom_call.1} parent=1 // pred_fallthru
      _
    // Predicated region
    $region22: #{tpu_custom_call.1} parent=1 // pred_check
      _
    $region23: #{tpu_custom_call.1} parent=1 // pred_check_branch
      %458 = sbr.rel (0) target = $region25
    $region24: #{tpu_custom_call.1} parent=1 // pred_region
      %460 = vsyncadd [#allocation9], 0
      %s462 = sshll.u32 [#allocation8], 4
      %s463 = int_to_ptr.vmem [resolvable:$true] %s462
      %s464 = sshll.u32 %s3, 4
      %s465 = int_to_ptr.hbm [resolvable:$true] %s464
      %467 = dma.vmem_to_hbm [thread:$0]  %s463, 32, %s465, [#allocation9]
    $region25: #{tpu_custom_call.1} parent=1 // pred_fallthru
      _
    // Predicated region
    $region26: #{tpu_custom_call.1} parent=1 // pred_check
      _
    $region27: #{tpu_custom_call.1} parent=1 // pred_check_branch
      %469 = sbr.rel (0) target = $region29
    $region28: #{tpu_custom_call.1} parent=1 // pred_region
      %471 = dma.done [#allocation4], 32
    $region29: #{tpu_custom_call.1} parent=1 // pred_fallthru
      _
    // Predicated region
    $region30: #{tpu_custom_call.1} parent=1 // pred_check
      _
    $region31: #{tpu_custom_call.1} parent=1 // pred_check_branch
      %473 = sbr.rel (0) target = $region33
    $region32: #{tpu_custom_call.1} parent=1 // pred_region
      %475 = dma.done [#allocation9], 32
    $region33: #{tpu_custom_call.1} parent=1 // pred_fallthru
      _
    %476 = vsyncpa [#allocation3], 1
    %477 = vsyncpa [#allocation6], 1
    %478 = vsyncpa [#allocation4], 1
    %479 = vsyncpa [#allocation9], 1

</llo_original>
